<compile_context>
chip_gen: v7x
topology: tpu7x:2x2x1
jax: 0.10.0
libtpu: 0.0.40
codegen_flags: <defaults>
</compile_context>

<pallas_src>
import functools
import numpy as np
import jax
import jax.numpy as jnp
from jax.experimental import pallas as pl
from jax.experimental.pallas import tpu as pltpu


# ----------------------------------------------------------------------------
# warpgrid (Sound-of-Pixels definition) -> separable bilinear-interp matrices
# ----------------------------------------------------------------------------
def _interp_matrix(coords, in_size):
    """Bilinear interpolation matrix for grid_sample(align_corners=False, zeros)."""
    M = np.zeros((len(coords), in_size), np.float32)
    for i, c in enumerate(coords):
        p = ((c + 1.0) * in_size - 1.0) / 2.0
        p0 = int(np.floor(p))
        p1 = p0 + 1
        w1 = p - p0
        w0 = 1.0 - w1
        if 0 <= p0 < in_size:
            M[i, p0] += w0
        if 0 <= p1 < in_size:
            M[i, p1] += w1
    return M


def _warp_pair(HO, WO, H_in, W_in, warp):
    """F.grid_sample(x, warpgrid(B, HO, WO, warp)) == Wy @ x @ Wx^T."""
    x = np.linspace(-1.0, 1.0, WO)
    y = np.linspace(-1.0, 1.0, HO)
    if warp:
        gy = (np.power(21.0, (y + 1.0) / 2.0) - 11.0) / 10.0
    else:
        gy = np.log(y * 10.0 + 11.0) / np.log(21.0) * 2.0 - 1.0
    return _interp_matrix(gy, H_in), _interp_matrix(x, W_in)     # (HO,H_in), (WO,W_in)


def _round_up(n, m):
    return ((n + m - 1) // m) * m


def build_warp_constants(T, F0, FW):
    """grid_sample interpolation matrices, lane-dense and bf16 for the MXU."""
    Wy_w, Wx_w = _warp_pair(FW, T, F0, T, warp=True)     # warp:   (FW,F0), (T,T)
    Wy_u, Wx_u = _warp_pair(F0, T, FW, T, warp=False)    # unwarp: (F0,FW), (T,T)

    F0P = _round_up(F0, 128)     # pad the F0 input freq bins onto full 128 lanes
    FP = _round_up(F0, 128)      # pad the F0 output freq bins onto full 128 lanes

    wyT = np.zeros((F0P, FW), np.float32)
    wyT[:F0, :] = Wy_w.T                                           # (F0P, FW)
    wyuT = np.zeros((FW, FP), np.float32)
    wyuT[:, :F0] = Wy_u.T                                          # (FW, FP)

    return dict(
        F0P=F0P, FP=FP, FW=FW,
        # bf16 copies feed the MXU; per-batch (T,T) time-interp (no Kronecker blowup)
        wyT=jnp.asarray(wyT, jnp.bfloat16),
        wx_w=jnp.asarray(Wx_w, jnp.bfloat16),
        wyuT=jnp.asarray(wyuT, jnp.bfloat16),
        wx_u=jnp.asarray(Wx_u, jnp.bfloat16),
        # f32 originals kept only for the pure-JAX reference check
        ref_wy_w=jnp.asarray(Wy_w), ref_wx_w=jnp.asarray(Wx_w),
        ref_wy_u=jnp.asarray(Wy_u), ref_wx_u=jnp.asarray(Wx_u),
    )


# ----------------------------------------------------------------------------
# Pallas kernel 1: warp (grid_sample) + log, fused with the shared x @ w1 matmul
# ----------------------------------------------------------------------------
def _warp_front_kernel(x_ref, wx_ref, wyT_ref, w1_ref, mag_ref, h0_ref, *, apply_log):
    # x_ref: (T, F0P) lane-padded magnitude for one batch element, time on sublanes.
    x = (x_ref[...] + 1e-10).astype(jnp.bfloat16)                         # mag_mix + 1e-10
    tmp = jnp.dot(x, wyT_ref[...], preferred_element_type=jnp.float32)    # freq interp (T, FW)
    warped = jnp.dot(wx_ref[...], tmp.astype(jnp.bfloat16),
                     preferred_element_type=jnp.float32)                  # time interp (T, FW)
    if apply_log:
        # Floor never binds for these warpgrid params (min interp weight 0.5 * (mag+eps));
        # it only guards the torch log(0) = -inf hazard.
        warped = jnp.log(jnp.maximum(warped, 1e-12))
    mag_ref[...] = warped                                                 # lane-dense (T, FW)
    # shared, n-independent part of net_sound hoisted out of the mixture loop
    h0_ref[...] = jnp.dot(warped.astype(jnp.bfloat16), w1_ref[...],
                          preferred_element_type=jnp.float32)             # (T, K)


def warp_front(xT_pad, wx, wyT, w1, *, apply_log, B, T):
    F0P = xT_pad.shape[1]
    FW = wyT.shape[1]
    K = w1.shape[1]
    kernel = functools.partial(_warp_front_kernel, apply_log=apply_log)
    grid_spec = pltpu.PrefetchScalarGridSpec(
        num_scalar_prefetch=0,
        grid=(B,),
        in_specs=[
            pl.BlockSpec((T, F0P), lambda b: (b, 0)),      # per-batch T rows (pipelined)
            pl.BlockSpec((T, T), lambda b: (0, 0)),        # Wx_w   (resident, bf16)
            pl.BlockSpec((F0P, FW), lambda b: (0, 0)),     # Wy_w^T (resident, bf16)
            pl.BlockSpec((FW, K), lambda b: (0, 0)),       # w1     (resident, bf16)
        ],
        out_specs=[
            pl.BlockSpec((T, FW), lambda b: (b, 0)),       # warped log-mag
            pl.BlockSpec((T, K), lambda b: (b, 0)),        # shared hidden h0
        ],
    )
    return pl.pallas_call(
        kernel,
        out_shape=(jax.ShapeDtypeStruct((B * T, FW), jnp.float32),
                   jax.ShapeDtypeStruct((B * T, K), jnp.float32)),
        grid_spec=grid_spec,
        compiler_params=pltpu.CompilerParams(
            dimension_semantics=("parallel",),             # v7x: shard batches across TCs
            vmem_limit_bytes=32 * 1024 * 1024),            # fits v5e/v6e/v7x scoped VMEM
    )(xT_pad, wx, wyT, w1)


# ----------------------------------------------------------------------------
# Pallas kernel 2: FiLM -> ReLU -> @w2 -> sigmoid -> un-warp -> masked BCE partials
# ----------------------------------------------------------------------------
def _sound_unwarp_bce_kernel(h0_ref, gamma_ref, beta_ref, w2_ref, b2_ref,
                             wxu_ref, wyuT_ref, gt_ref, pm_ref, loss_ref, *, F0, B):
    n = pl.program_id(0)
    b = pl.program_id(1)
    row = n * B + b
    # gamma/beta live once per (n,b); broadcast across T (sublanes) in-register.
    gamma = gamma_ref[pl.ds(row, 1), :]                                   # (1, K)
    beta = beta_ref[pl.ds(row, 1), :]                                     # (1, K)
    h = jnp.maximum(h0_ref[...] * gamma + beta, 0.0)                      # FiLM + ReLU (T, K)
    logits = jnp.dot(h.astype(jnp.bfloat16), w2_ref[...],
                     preferred_element_type=jnp.float32) + b2_ref[...]    # (T, FW)
    pm_w = jax.nn.sigmoid(logits)                                         # sound_activation (EUP)
    # un-warp grid_sample as two small matmuls; output lanes are zero-padded F0 bins.
    tmp = jnp.dot(pm_w.astype(jnp.bfloat16), wyuT_ref[...],
                  preferred_element_type=jnp.float32)                     # (T, FP)
    pm_u = jnp.dot(wxu_ref[...], tmp.astype(jnp.bfloat16),
                   preferred_element_type=jnp.float32)                    # (T, FP)
    pm_ref[...] = pm_u                                                    # lane-dense store
    # weighted BCE (weight == 1).  Padded lanes masked with an in-kernel iota — no
    # all-ones weight array is DMA'd from HBM.
    # TODO(synk): if the v5e EUP slot saturates, restrict the two logs to the
    # F0-valid lane tile only.
    pr = jnp.clip(pm_u, 1e-7, 1.0 - 1e-7)
    gt = gt_ref[...]
    lane_ok = jax.lax.broadcasted_iota(jnp.int32, pm_u.shape, 1) < F0
    bce = -(gt * jnp.log(pr) + (1.0 - gt) * jnp.log(1.0 - pr))
    part = jnp.sum(jnp.where(lane_ok, bce, 0.0))
    # Per-(n,b) partial sum written to its own lane-dense block (megacore-safe).
    loss_ref[...] = jnp.broadcast_to(part, loss_ref.shape).astype(jnp.float32)


def sound_unwarp_bce(h0, gamma, beta, w2, b2, wxu, wyuT, gt_l, *, N, B, T, F0):
    K = h0.shape[1]
    FW = w2.shape[1]
    FP = wyuT.shape[1]
    NB = N * B
    kernel = functools.partial(_sound_unwarp_bce_kernel, F0=F0, B=B)
    grid_spec = pltpu.PrefetchScalarGridSpec(
        num_scalar_prefetch=0,
        grid=(N, B),
        in_specs=[
            pl.BlockSpec((T, K), lambda n, b: (b, 0)),            # h0: replicated over n via index_map
            pl.BlockSpec((NB, K), lambda n, b: (0, 0)),           # gamma (tiny, resident)
            pl.BlockSpec((NB, K), lambda n, b: (0, 0)),           # beta  (tiny, resident)
            pl.BlockSpec((K, FW), lambda n, b: (0, 0)),           # w2    (resident, bf16)
            pl.BlockSpec((1, FW), lambda n, b: (0, 0)),           # b2    (resident)
            pl.BlockSpec((T, T), lambda n, b: (0, 0)),            # Wx_u  (resident, bf16)
            pl.BlockSpec((FW, FP), lambda n, b: (0, 0)),          # Wy_u^T(resident, bf16)
            pl.BlockSpec((T, FP), lambda n, b: (n * B + b, 0)),   # gt masks (pipelined)
        ],
        out_specs=[
            pl.BlockSpec((T, FP), lambda n, b: (n * B + b, 0)),   # pred mask (lane-padded)
            pl.BlockSpec((8, 128), lambda n, b: (n * B + b, 0)),  # per-(n,b) BCE partial sum
        ],
    )
    return pl.pallas_call(
        kernel,
        out_shape=(jax.ShapeDtypeStruct((NB * T, FP), jnp.float32),
                   jax.ShapeDtypeStruct((NB * 8, 128), jnp.float32)),
        grid_spec=grid_spec,
        compiler_params=pltpu.CompilerParams(
            dimension_semantics=("parallel", "parallel"),         # v7x: shard (n,b) across TCs
            vmem_limit_bytes=32 * 1024 * 1024),
    )(h0, gamma, beta, w2, b2, wxu, wyuT, gt_l)


# ----------------------------------------------------------------------------
# Conditioning features (net_frame.forward_multiframe / net_motion surrogates)
# ----------------------------------------------------------------------------
def pooled_feature(x, w, b, *, apply_sigmoid):
    """Global average pool over (T,H,W) + linear (+sigmoid img_activation).

    Kept in plain XLA on purpose: C=3 / D=32 uses <3% of a vreg and is far below MXU
    granularity, so a dedicated Pallas launch would cost more than the compute."""
    pooled = jnp.mean(x, axis=(2, 3, 4))                     # (B, C)
    out = pooled @ w + b                                     # (B, D)
    return jax.nn.sigmoid(out) if apply_sigmoid else out


# ----------------------------------------------------------------------------
# NetWrapper.forward
# ----------------------------------------------------------------------------
def net_wrapper_forward(batch_data, params, args):
    mag_mix = batch_data['mag_mix']                  # (B, F0, T)
    mags = batch_data['mags']                        # list of N, (B, F0, T)
    frames = batch_data['appearance_imags']          # list of N, (B, C, Tf, H, W)
    clip_imgs = batch_data['clips_frames']           # list of N, (B, C, Tc, H, W)
    gt_masks = batch_data['masks']                   # list of N, (B, F0, T)

    N = args['num_mix']
    B, F0, T = mag_mix.shape
    c = params['warp_consts']
    FW, F0P, FP = c['FW'], c['F0P'], c['FP']
    K = params['w1'].shape[1]

    weight = jnp.ones_like(mag_mix)                  # torch.ones_like(mag_mix)

    # --- Pallas launch 1: warp (grid_sample) + log fused with the shared x@w1 matmul ---
    xT = jnp.transpose(mag_mix, (0, 2, 1)).reshape(B * T, F0)
    xT = jnp.pad(xT, ((0, 0), (0, F0P - F0)))        # lane-pad F0 -> 128
    mag_flat, h0 = warp_front(xT, c['wx_w'], c['wyT'],
                              params['w1'].astype(jnp.bfloat16),
                              apply_log=args['use_mel'], B=B, T=T)
    # 'mag_mix' is returned in the torch layout (B, 256, T)
    mag_mix_out = jnp.transpose(mag_flat.reshape(B, T, FW), (0, 2, 1))

    # --- conditioning features -> FiLM gamma/beta (plain XLA, tiny) ---
    gammas, betas = [], []
    for n in range(N):
        ff = pooled_feature(frames[n], params['w_frame'], params['b_frame'],
                            apply_sigmoid=True)      # img_activation = 'sigmoid'
        fm = pooled_feature(clip_imgs[n], params['w_motion'], params['b_motion'],
                            apply_sigmoid=False)
        gammas.append(ff @ params['wg'])             # (B, K)
        betas.append(fm @ params['wb'])              # (B, K)
    gamma = jnp.stack(gammas).reshape(N * B, K)      # one row per (n,b); no T-fold blowup
    beta = jnp.stack(betas).reshape(N * B, K)

    # gt masks in the kernel's lane-dense (n,b,t | padded-f0) layout
    gt_l = jnp.transpose(jnp.stack(gt_masks), (0, 1, 3, 2)).reshape(N * B * T, F0)
    gt_l = jnp.pad(gt_l, ((0, 0), (0, FP - F0)))

    # --- Pallas launch 2: FiLM-MLP -> sigmoid -> un-warp -> masked-BCE partials ---
    pm_flat, loss_parts = sound_unwarp_bce(
        h0, gamma, beta, params['w2'].astype(jnp.bfloat16), params['b2'],
        c['wx_u'], c['wyuT'], gt_l, N=N, B=B, T=T, F0=F0)

    # lane-padding dropped only at the consumer
    pm = pm_flat.reshape(N, B, T, FP)[..., :F0]
    pred_masks = [jnp.transpose(pm[n], (0, 2, 1)) for n in range(N)]   # (B, F0, T) each

    # crit: weighted BCE (mean over elements), averaged over the N mixtures
    loss_sum = jnp.sum(loss_parts.reshape(N * B, 8, 128)[:, 0, 0])
    err = (loss_sum / (N * B * F0 * T)).reshape(1)

    return err, {'pred_masks': pred_masks, 'gt_masks': gt_masks,
                 'mag_mix': mag_mix_out, 'mags': mags, 'weight': weight}


# ----------------------------------------------------------------------------
# Pure-JAX reference (for a correctness sanity check)
# ----------------------------------------------------------------------------
def _reference_forward(batch_data, params, args):
    c = params['warp_consts']
    Wy_w, Wx_w = c['ref_wy_w'], c['ref_wx_w']
    Wy_u, Wx_u = c['ref_wy_u'], c['ref_wx_u']
    mag_mix = batch_data['mag_mix']
    N = args['num_mix']
    B, F0, T = mag_mix.shape

    mag_w = jnp.einsum('fg,bgs,ts->bft', Wy_w, mag_mix + 1e-10, Wx_w)   # (B, 256, T)
    mag_w = jnp.log(mag_w) if args['use_mel'] else mag_w

    errs, preds = [], []
    for n in range(N):
        ff = pooled_feature(batch_data['appearance_imags'][n], params['w_frame'],
                            params['b_frame'], apply_sigmoid=True)
        fm = pooled_feature(batch_data['clips_frames'][n], params['w_motion'],
                            params['b_motion'], apply_sigmoid=False)
        gamma, beta = ff @ params['wg'], fm @ params['wb']              # (B, K)
        x = jnp.transpose(mag_w, (0, 2, 1))                             # (B, T, 256)
        h = jnp.maximum(x @ params['w1'] * gamma[:, None, :] + beta[:, None, :], 0.0)
        pm_w = jax.nn.sigmoid(h @ params['w2'] + params['b2'])          # (B, T, 256)
        pm_w = jnp.transpose(pm_w, (0, 2, 1))                           # (B, 256, T)
        pm = jnp.einsum('fg,bgs,ts->bft', Wy_u, pm_w, Wx_u)             # (B, F0, T)
        preds.append(pm)
        pr = jnp.clip(pm, 1e-7, 1.0 - 1e-7)
        g = batch_data['masks'][n]
        bce = -(g * jnp.log(pr) + (1.0 - g) * jnp.log(1.0 - pr))
        errs.append(jnp.sum(bce) / (B * F0 * T))
    return sum(errs) / N, preds


# ----------------------------------------------------------------------------
if __name__ == "__main__":
    B, C, T = 2, 3, 8
    stft_frame = 32
    F0 = stft_frame // 2 + 1        # 17
    FW = 256                        # hardcoded warp target in the reference module
    Tf, Tc, H, W = 3, 4, 16, 16
    D, K = 32, 128                  # K=128: full MXU column utilization + lane-dense h0
    N = 2
    args = dict(num_mix=N, use_mel=True, stft_frame=stft_frame)

    key = jax.random.PRNGKey(0)
    ks = jax.random.split(key, 16)

    mag_mix = jax.random.uniform(ks[0], (B, F0, T), jnp.float32, 0.01, 1.0)
    mags = [jax.random.uniform(ks[1 + n], (B, F0, T), jnp.float32, 0.01, 1.0) for n in range(N)]
    gt_masks = [jax.random.uniform(ks[3 + n], (B, F0, T), jnp.float32, 0.05, 0.95) for n in range(N)]
    frames = [jax.random.normal(ks[5 + n], (B, C, Tf, H, W), jnp.float32) for n in range(N)]
    clips = [jax.random.normal(ks[7 + n], (B, C, Tc, H, W), jnp.float32) for n in range(N)]

    params = {
        'w_frame': 0.1 * jax.random.normal(ks[9], (C, D), jnp.float32),
        'b_frame': jnp.zeros((1, D), jnp.float32),
        'w_motion': 0.1 * jax.random.normal(ks[10], (C, D), jnp.float32),
        'b_motion': jnp.zeros((1, D), jnp.float32),
        'w1': 0.05 * jax.random.normal(ks[11], (FW, K), jnp.float32),
        'wg': 0.1 * jax.random.normal(ks[12], (D, K), jnp.float32),
        'wb': 0.1 * jax.random.normal(ks[13], (D, K), jnp.float32),
        'w2': 0.05 * jax.random.normal(ks[14], (K, FW), jnp.float32),
        'b2': jnp.zeros((1, FW), jnp.float32),
        'warp_consts': build_warp_constants(T, F0, FW),
    }

    batch_data = {
        'mag_mix': mag_mix,
        'mags': mags,
        'appearance_imags': frames,
        'clips_frames': clips,
        'masks': gt_masks,
    }

    err, outs = net_wrapper_forward(batch_data, params, args)
    jax.block_until_ready(err)
    jax.block_until_ready(outs['pred_masks'][0])

    assert err.shape == (1,) and np.isfinite(np.asarray(err)).all()
    assert outs['pred_masks'][0].shape == (B, F0, T)
    assert outs['mag_mix'].shape == (B, FW, T)

    # correctness sanity check against a pure-JAX f32 reference
    with jax.default_matmul_precision('float32'):
        err_ref, preds_ref = _reference_forward(batch_data, params, args)
    np.testing.assert_allclose(np.asarray(err)[0], float(err_ref), rtol=5e-2, atol=5e-3)
    np.testing.assert_allclose(np.asarray(outs['pred_masks'][0]), np.asarray(preds_ref[0]),
                               rtol=5e-2, atol=2e-2)

    print("KERNEL_OK")
</pallas_src>

<mosaic_0001>
module attributes {stable_mosaic.version = 11 : i64} {
  func.func @_warp_front_kernel(%arg0: i32, %arg1: memref<8x128xf32, #tpu.memory_space<vmem>>, %arg2: memref<8x8xbf16, #tpu.memory_space<vmem>>, %arg3: memref<128x256xbf16, #tpu.memory_space<vmem>>, %arg4: memref<256x128xbf16, #tpu.memory_space<vmem>>, %arg5: memref<8x256xf32, #tpu.memory_space<vmem>>, %arg6: memref<8x128xf32, #tpu.memory_space<vmem>>) attributes {dimension_semantics = [#tpu.dimension_semantics<parallel>], iteration_bounds = array<i64: 2>, scalar_prefetch = 0 : i64, scratch_operands = 0 : i64, tpu.core_type = #tpu.core_type<tc>, window_params = [{transform_indices = @transform_0, window_bounds = array<i64: 8, 128>}, {pipeline_mode = #tpu.pipeline_mode<synchronous>, transform_indices = @transform_1, window_bounds = array<i64: 8, 8>}, {pipeline_mode = #tpu.pipeline_mode<synchronous>, transform_indices = @transform_2, window_bounds = array<i64: 128, 256>}, {pipeline_mode = #tpu.pipeline_mode<synchronous>, transform_indices = @transform_3, window_bounds = array<i64: 256, 128>}, {transform_indices = @transform_4, window_bounds = array<i64: 8, 256>}, {transform_indices = @transform_5, window_bounds = array<i64: 8, 128>}]} {
    %c0 = arith.constant 0 : index
    %c0_0 = arith.constant 0 : index
    %0 = vector.load %arg1[%c0, %c0_0] : memref<8x128xf32, #tpu.memory_space<vmem>>, vector<8x128xf32>
    %cst = arith.constant 1.000000e-10 : f32
    %1 = vector.broadcast %cst : f32 to vector<8x128xf32>
    %2 = arith.addf %0, %1 : vector<8x128xf32>
    %3 = arith.truncf %2 : vector<8x128xf32> to vector<8x128xbf16>
    %c0_1 = arith.constant 0 : index
    %c0_2 = arith.constant 0 : index
    %4 = vector.load %arg3[%c0_1, %c0_2] : memref<128x256xbf16, #tpu.memory_space<vmem>>, vector<128x256xbf16>
    %cst_3 = arith.constant dense<0.000000e+00> : vector<8x256xf32>
    %5 = tpu.matmul %3, %4, %cst_3 {dimension_numbers = #tpu.dot_dimension_numbers<[1], [0], [0], [1], [0, 0, 1, 1], [], []>} : vector<8x128xbf16>, vector<128x256xbf16>, vector<8x256xf32> -> vector<8x256xf32>
    %c0_4 = arith.constant 0 : index
    %c0_5 = arith.constant 0 : index
    %6 = vector.load %arg2[%c0_4, %c0_5] : memref<8x8xbf16, #tpu.memory_space<vmem>>, vector<8x8xbf16>
    %7 = arith.truncf %5 : vector<8x256xf32> to vector<8x256xbf16>
    %cst_6 = arith.constant dense<0.000000e+00> : vector<8x256xf32>
    %8 = tpu.matmul %6, %7, %cst_6 {dimension_numbers = #tpu.dot_dimension_numbers<[1], [0], [0], [1], [0, 0, 1, 1], [], []>} : vector<8x8xbf16>, vector<8x256xbf16>, vector<8x256xf32> -> vector<8x256xf32>
    %cst_7 = arith.constant 9.99999996E-13 : f32
    %9 = vector.broadcast %cst_7 : f32 to vector<8x256xf32>
    %10 = arith.maximumf %8, %9 : vector<8x256xf32>
    %11 = math.log %10 : vector<8x256xf32>
    %c0_8 = arith.constant 0 : index
    %c0_9 = arith.constant 0 : index
    %12 = vector.load %arg5[%c0_8, %c0_9] : memref<8x256xf32, #tpu.memory_space<vmem>>, vector<8x256xf32>
    tpu.vector_store %arg5[%c0_8, %c0_9], %11 {strides = array<i32>} : memref<8x256xf32, #tpu.memory_space<vmem>>, vector<8x256xf32>,
    %13 = arith.truncf %11 : vector<8x256xf32> to vector<8x256xbf16>
    %c0_10 = arith.constant 0 : index
    %c0_11 = arith.constant 0 : index
    %14 = vector.load %arg4[%c0_10, %c0_11] : memref<256x128xbf16, #tpu.memory_space<vmem>>, vector<256x128xbf16>
    %cst_12 = arith.constant dense<0.000000e+00> : vector<8x128xf32>
    %15 = tpu.matmul %13, %14, %cst_12 {dimension_numbers = #tpu.dot_dimension_numbers<[1], [0], [0], [1], [0, 0, 1, 1], [], []>} : vector<8x256xbf16>, vector<256x128xbf16>, vector<8x128xf32> -> vector<8x128xf32>
    %c0_13 = arith.constant 0 : index
    %c0_14 = arith.constant 0 : index
    %16 = vector.load %arg6[%c0_13, %c0_14] : memref<8x128xf32, #tpu.memory_space<vmem>>, vector<8x128xf32>
    tpu.vector_store %arg6[%c0_13, %c0_14], %15 {strides = array<i32>} : memref<8x128xf32, #tpu.memory_space<vmem>>, vector<8x128xf32>,
    return
  }
  func.func @transform_0(%arg0: i32) -> (i32, i32) {
    %c0_i32 = arith.constant 0 : i32
    %c0_i32_0 = arith.constant 0 : i32
    return %arg0, %c0_i32 : i32, i32
  }
  func.func @transform_1(%arg0: i32) -> (i32, i32) {
    %c0_i32 = arith.constant 0 : i32
    %c0_i32_0 = arith.constant 0 : i32
    %c0_i32_1 = arith.constant 0 : i32
    return %c0_i32, %c0_i32_0 : i32, i32
  }
  func.func @transform_2(%arg0: i32) -> (i32, i32) {
    %c0_i32 = arith.constant 0 : i32
    %c0_i32_0 = arith.constant 0 : i32
    %c0_i32_1 = arith.constant 0 : i32
    return %c0_i32, %c0_i32_0 : i32, i32
  }
  func.func @transform_3(%arg0: i32) -> (i32, i32) {
    %c0_i32 = arith.constant 0 : i32
    %c0_i32_0 = arith.constant 0 : i32
    %c0_i32_1 = arith.constant 0 : i32
    return %c0_i32, %c0_i32_0 : i32, i32
  }
  func.func @transform_4(%arg0: i32) -> (i32, i32) {
    %c0_i32 = arith.constant 0 : i32
    %c0_i32_0 = arith.constant 0 : i32
    return %arg0, %c0_i32 : i32, i32
  }
  func.func @transform_5(%arg0: i32) -> (i32, i32) {
    %c0_i32 = arith.constant 0 : i32
    %c0_i32_0 = arith.constant 0 : i32
    return %arg0, %c0_i32 : i32, i32
  }
}

</mosaic_0001>

<llo_original>
// kernel: tpu_custom_call.1
$region0: #{tpu_custom_call.1}
  #allocation0 [shape = 'u32[]', space=smem, size = 0x4, offset = 0x4, fixed_abs, tag = 'smem constant byte address 0x4 - core index']
  #allocation1 [shape = 'u32[144,128]{1,0:T(1,128)}', space=vmem, size = 0x12000, scoped, tag = 'internal scratch']
  %s0 = inlined_call_operand.hbm [shape: f32[16,128], index: 0, kind: input, shape index: {}]
  %s1 = inlined_call_operand.hbm [shape: bf16[8,8], index: 1, kind: input, shape index: {}]
  %s2 = inlined_call_operand.hbm [shape: bf16[128,256], index: 2, kind: input, shape index: {}]
  %s3 = inlined_call_operand.hbm [shape: bf16[256,128], index: 3, kind: input, shape index: {}]
  %s4 = inlined_call_operand.hbm [shape: f32[16,256], index: 4, kind: output, shape index: {0}]
  %s5 = inlined_call_operand.hbm [shape: f32[16,128], index: 5, kind: output, shape index: {1}]
  %6 = xla_tuple %s4, %s5
  %s7 = sld [smem:[#allocation0]]
  $region73: #{tpu_custom_call.1} parent=0
    _
  %s9 = ssub.s32 1, %s7
  %s10 = scalar_select 0, %s9, %s7
  $region1: #{tpu_custom_call.1} parent=0
    #allocation2 [shape = 'u8[8192]{0}', space=vmem, size = 0x2000, scoped, tag = 'input window, operand 0']
    #allocation3 [shape = 's32[2]{0}', space=sflag, size = 0x8, scoped, tag = 'scoped memory for tpu_custom_call.1']
    #allocation4 [shape = 's32[2]{0}', space=sflag, size = 0x8, scoped, tag = 'scoped memory for tpu_custom_call.1']
    #allocation5 [shape = 'u8[2048]{0}', space=vmem, size = 0x800, scoped, tag = 'input window, operand 1, single buffered']
    #allocation6 [shape = 's32[1]{0}', space=sflag, size = 0x4, scoped, tag = 'scoped memory for tpu_custom_call.1']
    #allocation7 [shape = 'u8[65536]{0}', space=vmem, size = 0x10000, scoped, tag = 'input window, operand 2, single buffered']
    #allocation8 [shape = 'u8[65536]{0}', space=vmem, size = 0x10000, scoped, tag = 'input window, operand 3, single buffered']
    #allocation9 [shape = 's32[1]{0}', space=sflag, size = 0x4, scoped, tag = 'scoped memory for tpu_custom_call.1']
    #allocation10 [shape = 'u8[16384]{0}', space=vmem, size = 0x4000, scoped, tag = 'output window, operand 0']
    #allocation11 [shape = 'u8[8192]{0}', space=vmem, size = 0x2000, scoped, tag = 'output window, operand 1']
    #allocation12 [shape = 's32[2]{0}', space=sflag, size = 0x8, scoped, tag = 'scoped memory for tpu_custom_call.1']
    %11 = vsyncpa [#allocation3], 0
    %s12 = scalar_lea.sflag [#allocation3], 1
    %13 = vsyncpa %s12, 0
    %14 = vsyncpa [#allocation6], 0
    %15 = vsyncpa [#allocation9], 0
    %16 = vsyncpa [#allocation4], 0
    %s17 = scalar_lea.sflag [#allocation4], 1
    %18 = vsyncpa %s17, 0
    %19 = vsyncpa [#allocation12], 0
    %s20 = scalar_lea.sflag [#allocation12], 1
    %21 = vsyncpa %s20, 0
    loop: start=0, step=1, limit=4
    $region2: #{tpu_custom_call.1} parent=1 // loop_pre_header
      _
    $region3: #{tpu_custom_call.1} parent=1 // loop_header
      %s23 = sphi 0, %s27
      %p24 = scmp.ge.s32.totalorder %s23, 4
      %s33 = sphi 0, %s35
      %s36 = sphi 0, %s33
      %s37 = sphi 0, %s36
      %s53 = sphi 0, %s37
      %s57 = sphi 0, %s57
      %s59 = sphi 0, %s57
      %s60 = sphi 0, %s59
      %s74 = sphi 0, %s60
      %s78 = sphi 0, %s78
      %s80 = sphi 0, %s78
      %s81 = sphi 0, %s80
      %s95 = sphi 0, %s81
      %s99 = sphi 0, %s99
      %s101 = sphi 0, %s99
      %s102 = sphi 0, %s101
      %s116 = sphi 0, %s102
      %s122 = sphi 0, %s124
      %s125 = sphi 0, %s122
      %s126 = sphi 0, %s125
      %s142 = sphi 0, %s126
      %s148 = sphi 0, %s150
      %s151 = sphi 0, %s148
      %s152 = sphi 0, %s151
      %s168 = sphi 0, %s152
    $region4: #{tpu_custom_call.1} parent=1 // loop_header_branch
      %26 = sbr.rel (%p24) target = $region8
    $region5: #{tpu_custom_call.1} parent=1 // loop_body
      %s28 = ssub.s32 %s23, 1
      %s29 = ssub.s32 %s23, 2
      %s30 = sadd.s32 %s23, 1
      %s31 = ssub.s32 %s23, %s30
      %p32 = scmp.eq.s32.totalorder %s31, 0
      %s34 = sadd.s32 %s33, 1
      %s35 = scalar_select %p32, %s33, %s34
      %p38 = pneg %p32
      %p39 = scmp.eq.s32.totalorder %s23, 1
      %p40 = por %p38, %p39
      %p41 = scmp.ne.s32.totalorder %s33, %s36
      %p42 = scmp.eq.s32.totalorder %s23, 0
      %p43 = por %p41, %p42
      %p44 = scmp.ne.s32.totalorder %s33, %s36
      %p45 = scmp.eq.s32.totalorder %s28, 1
      %p46 = por %p44, %p45
      %p47 = scmp.ne.s32.totalorder %s36, %s37
      %p48 = scmp.eq.s32.totalorder %s28, 0
      %p49 = por %p47, %p48
      %p50 = scmp.ne.s32.totalorder %s36, %s37
      %p51 = scmp.eq.s32.totalorder %s29, 1
      %p52 = por %p50, %p51
      %p54 = scmp.ne.s32.totalorder %s37, %s53
      %p55 = scmp.eq.s32.totalorder %s29, 0
      %p56 = por %p54, %p55
      %s58 = sadd.s32 %s57, 1
      %p61 = scmp.eq.s32.totalorder %s23, 1
      %p62 = scmp.ne.s32.totalorder %s57, %s59
      %p63 = scmp.eq.s32.totalorder %s23, 0
      %p64 = por %p62, %p63
      %p65 = scmp.ne.s32.totalorder %s57, %s59
      %p66 = scmp.eq.s32.totalorder %s28, 1
      %p67 = por %p65, %p66
      %p68 = scmp.ne.s32.totalorder %s59, %s60
      %p69 = scmp.eq.s32.totalorder %s28, 0
      %p70 = por %p68, %p69
      %p71 = scmp.ne.s32.totalorder %s59, %s60
      %p72 = scmp.eq.s32.totalorder %s29, 1
      %p73 = por %p71, %p72
      %p75 = scmp.ne.s32.totalorder %s60, %s74
      %p76 = scmp.eq.s32.totalorder %s29, 0
      %p77 = por %p75, %p76
      %s79 = sadd.s32 %s78, 1
      %p82 = scmp.eq.s32.totalorder %s23, 1
      %p83 = scmp.ne.s32.totalorder %s78, %s80
      %p84 = scmp.eq.s32.totalorder %s23, 0
      %p85 = por %p83, %p84
      %p86 = scmp.ne.s32.totalorder %s78, %s80
      %p87 = scmp.eq.s32.totalorder %s28, 1
      %p88 = por %p86, %p87
      %p89 = scmp.ne.s32.totalorder %s80, %s81
      %p90 = scmp.eq.s32.totalorder %s28, 0
      %p91 = por %p89, %p90
      %p92 = scmp.ne.s32.totalorder %s80, %s81
      %p93 = scmp.eq.s32.totalorder %s29, 1
      %p94 = por %p92, %p93
      %p96 = scmp.ne.s32.totalorder %s81, %s95
      %p97 = scmp.eq.s32.totalorder %s29, 0
      %p98 = por %p96, %p97
      %s100 = sadd.s32 %s99, 1
      %p103 = scmp.eq.s32.totalorder %s23, 1
      %p104 = scmp.ne.s32.totalorder %s99, %s101
      %p105 = scmp.eq.s32.totalorder %s23, 0
      %p106 = por %p104, %p105
      %p107 = scmp.ne.s32.totalorder %s99, %s101
      %p108 = scmp.eq.s32.totalorder %s28, 1
      %p109 = por %p107, %p108
      %p110 = scmp.ne.s32.totalorder %s101, %s102
      %p111 = scmp.eq.s32.totalorder %s28, 0
      %p112 = por %p110, %p111
      %p113 = scmp.ne.s32.totalorder %s101, %s102
      %p114 = scmp.eq.s32.totalorder %s29, 1
      %p115 = por %p113, %p114
      %p117 = scmp.ne.s32.totalorder %s102, %s116
      %p118 = scmp.eq.s32.totalorder %s29, 0
      %p119 = por %p117, %p118
      %s120 = ssub.s32 %s23, %s30
      %p121 = scmp.eq.s32.totalorder %s120, 0
      %s123 = sadd.s32 %s122, 1
      %s124 = scalar_select %p121, %s122, %s123
      %p127 = pneg %p121
      %p128 = scmp.eq.s32.totalorder %s23, 1
      %p129 = por %p127, %p128
      %p130 = scmp.ne.s32.totalorder %s122, %s125
      %p131 = scmp.eq.s32.totalorder %s23, 0
      %p132 = por %p130, %p131
      %p133 = scmp.ne.s32.totalorder %s122, %s125
      %p134 = scmp.eq.s32.totalorder %s28, 1
      %p135 = por %p133, %p134
      %p136 = scmp.ne.s32.totalorder %s125, %s126
      %p137 = scmp.eq.s32.totalorder %s28, 0
      %p138 = por %p136, %p137
      %p139 = scmp.ne.s32.totalorder %s125, %s126
      %p140 = scmp.eq.s32.totalorder %s29, 1
      %p141 = por %p139, %p140
      %p143 = scmp.ne.s32.totalorder %s126, %s142
      %p144 = scmp.eq.s32.totalorder %s29, 0
      %p145 = por %p143, %p144
      %s146 = ssub.s32 %s23, %s30
      %p147 = scmp.eq.s32.totalorder %s146, 0
      %s149 = sadd.s32 %s148, 1
      %s150 = scalar_select %p147, %s148, %s149
      %p153 = pneg %p147
      %p154 = scmp.eq.s32.totalorder %s23, 1
      %p155 = por %p153, %p154
      %p156 = scmp.ne.s32.totalorder %s148, %s151
      %p157 = scmp.eq.s32.totalorder %s23, 0
      %p158 = por %p156, %p157
      %p159 = scmp.ne.s32.totalorder %s148, %s151
      %p160 = scmp.eq.s32.totalorder %s28, 1
      %p161 = por %p159, %p160
      %p162 = scmp.ne.s32.totalorder %s151, %s152
      %p163 = scmp.eq.s32.totalorder %s28, 0
      %p164 = por %p162, %p163
      %p165 = scmp.ne.s32.totalorder %s151, %s152
      %p166 = scmp.eq.s32.totalorder %s29, 1
      %p167 = por %p165, %p166
      %p169 = scmp.ne.s32.totalorder %s152, %s168
      %p170 = scmp.eq.s32.totalorder %s29, 0
      %p171 = por %p169, %p170
      %p172 = scmp.le.s32.totalorder 1, %s23
      %p173 = scmp.lt.s32.totalorder %s23, 3
      %p174 = pnand %p172, %p173
      %p175 = pneg %p174
      // Predicated region
      $region9: #{tpu_custom_call.1} parent=5 // pred_check
        _
      $region10: #{tpu_custom_call.1} parent=5 // pred_check_branch
        %177 = sbr.rel (%p174) target = $region12
      $region11: #{tpu_custom_call.1} parent=5 // pred_region
        %s178 = ssub.s32 %s23, 1
        // Predicated region
        $region13: #{tpu_custom_call.1} parent=11 // pred_check
          %p179 = pneg %p70
        $region14: #{tpu_custom_call.1} parent=11 // pred_check_branch
          %181 = sbr.rel (%p179) target = $region16
        $region15: #{tpu_custom_call.1} parent=11 // pred_region
          %s183 = ssub.s32 64, 64
          %184 = vsyncadd [#allocation6], %s183
          %s186 = sshll.u32 [#allocation5], 4
          %s187 = int_to_ptr.vmem [resolvable:$true] %s186
          %189 = dma.hbm_to_vmem [thread:$0]  %s1, 64, %s187, [#allocation6]
        $region16: #{tpu_custom_call.1} parent=11 // pred_fallthru
          _
        // Predicated region
        $region17: #{tpu_custom_call.1} parent=11 // pred_check
          %p190 = pneg %p91
        $region18: #{tpu_custom_call.1} parent=11 // pred_check_branch
          %192 = sbr.rel (%p190) target = $region20
        $region19: #{tpu_custom_call.1} parent=11 // pred_region
          %s194 = ssub.s32 2048, 2048
          %195 = vsyncadd [#allocation6], %s194
          %s196 = sshll.u32 [#allocation7], 4
          %s197 = int_to_ptr.vmem [resolvable:$true] %s196
          %202 = dma.hbm_to_vmem [thread:$0]  %s2, 2048, %s197, [#allocation6], 128, 128, 8
        $region20: #{tpu_custom_call.1} parent=11 // pred_fallthru
          _
        // Predicated region
        $region21: #{tpu_custom_call.1} parent=11 // pred_check
          %p203 = pneg %p112
        $region22: #{tpu_custom_call.1} parent=11 // pred_check_branch
          %205 = sbr.rel (%p203) target = $region24
        $region23: #{tpu_custom_call.1} parent=11 // pred_region
          %s207 = ssub.s32 2048, 2048
          %208 = vsyncadd [#allocation9], %s207
          %s209 = sshll.u32 [#allocation8], 4
          %s210 = int_to_ptr.vmem [resolvable:$true] %s209
          %215 = dma.hbm_to_vmem [thread:$0]  %s3, 2048, %s210, [#allocation9], 64, 64, 4
        $region24: #{tpu_custom_call.1} parent=11 // pred_fallthru
          _
      $region12: #{tpu_custom_call.1} parent=5 // pred_fallthru
        _
      %p216 = scmp.lt.s32.totalorder %s23, 2
      // Predicated region
      $region25: #{tpu_custom_call.1} parent=5 // pred_check
        %p217 = pneg %p216
      $region26: #{tpu_custom_call.1} parent=5 // pred_check_branch
        %219 = sbr.rel (%p217) target = $region28
      $region27: #{tpu_custom_call.1} parent=5 // pred_region
        // Predicated region
        $region29: #{tpu_custom_call.1} parent=27 // pred_check
          %p220 = pneg %p43
        $region30: #{tpu_custom_call.1} parent=27 // pred_check_branch
          %222 = sbr.rel (%p220) target = $region32
        $region31: #{tpu_custom_call.1} parent=27 // pred_region
          %s223 = sand.u32 %s33, 1
          %s224 = scalar_lea.sflag [#allocation3], %s223
          %s225 = sand.u32 %s33, 1
          %s226 = smul.addr %s225, 8
          %s227 = scalar_lea.vmem [#allocation2], %s226
          %s229 = ssub.s32 128, 128
          %230 = vsyncadd %s224, %s229
          %s231 = smul.addr %s23, 128
          %s232 = scalar_lea.hbm %s0, %s231
          %s234 = sshll.u32 %s227, 4
          %s235 = int_to_ptr.vmem [resolvable:$true] %s234
          %237 = dma.hbm_to_vmem [thread:$0]  %s232, 128, %s235, %s224
        $region32: #{tpu_custom_call.1} parent=27 // pred_fallthru
          _
      $region28: #{tpu_custom_call.1} parent=5 // pred_fallthru
        _
      %p238 = scmp.le.s32.totalorder 1, %s23
      %p239 = scmp.lt.s32.totalorder %s23, 3
      %p240 = pnand %p238, %p239
      %p241 = pneg %p240
      // Predicated region
      $region33: #{tpu_custom_call.1} parent=5 // pred_check
        _
      $region34: #{tpu_custom_call.1} parent=5 // pred_check_branch
        %243 = sbr.rel (%p240) target = $region36
      $region35: #{tpu_custom_call.1} parent=5 // pred_region
        %s244 = ssub.s32 %s23, 1
        %s245 = sand.u32 %s36, 1
        %s246 = scalar_lea.sflag [#allocation3], %s245
        %s247 = sand.u32 %s36, 1
        %s248 = smul.addr %s247, 8
        %s249 = scalar_lea.vmem [#allocation2], %s248
        // Predicated region
        $region37: #{tpu_custom_call.1} parent=35 // pred_check
          %p250 = pneg %p49
        $region38: #{tpu_custom_call.1} parent=35 // pred_check_branch
          %252 = sbr.rel (%p250) target = $region40
        $region39: #{tpu_custom_call.1} parent=35 // pred_region
          %253 = dma.done %s246, 128
        $region40: #{tpu_custom_call.1} parent=35 // pred_fallthru
          _
        // Predicated region
        $region41: #{tpu_custom_call.1} parent=35 // pred_check
          %p254 = pneg %p70
        $region42: #{tpu_custom_call.1} parent=35 // pred_check_branch
          %256 = sbr.rel (%p254) target = $region44
        $region43: #{tpu_custom_call.1} parent=35 // pred_region
          %257 = dma.done [#allocation6], 64
        $region44: #{tpu_custom_call.1} parent=35 // pred_fallthru
          _
        // Predicated region
        $region45: #{tpu_custom_call.1} parent=35 // pred_check
          %p258 = pneg %p91
        $region46: #{tpu_custom_call.1} parent=35 // pred_check_branch
          %260 = sbr.rel (%p258) target = $region48
        $region47: #{tpu_custom_call.1} parent=35 // pred_region
          %261 = dma.done [#allocation6], 2048
        $region48: #{tpu_custom_call.1} parent=35 // pred_fallthru
          _
        // Predicated region
        $region49: #{tpu_custom_call.1} parent=35 // pred_check
          %p262 = pneg %p112
        $region50: #{tpu_custom_call.1} parent=35 // pred_check_branch
          %264 = sbr.rel (%p262) target = $region52
        $region51: #{tpu_custom_call.1} parent=35 // pred_region
          %265 = dma.done [#allocation9], 2048
        $region52: #{tpu_custom_call.1} parent=35 // pred_fallthru
          _
        %s266 = sand.u32 %s36, 1
        %s267 = scalar_lea.sflag [#allocation3], %s266
        %s268 = sand.u32 %s36, 1
        %s269 = smul.addr %s268, 8
        %s270 = scalar_lea.vmem [#allocation2], %s269
        %p271 = pneg %p49
        %p272 = pneg %p46
        %p273 = pneg %p70
        %p274 = pneg %p67
        %p275 = pneg %p91
        %p276 = pneg %p88
        %p277 = pneg %p112
        %p278 = pneg %p109
        %p279 = pneg %p138
        %p280 = pneg %p135
        %s281 = sand.u32 %s125, 1
        %s282 = scalar_lea.sflag [#allocation4], %s281
        %s283 = sand.u32 %s125, 1
        %s284 = smul.addr %s283, 16
        %s285 = scalar_lea.vmem [#allocation10], %s284
        %p286 = pneg %p164
        %p287 = pneg %p161
        %s288 = sand.u32 %s151, 1
        %s289 = scalar_lea.sflag [#allocation12], %s288
        %s290 = sand.u32 %s151, 1
        %s291 = smul.addr %s290, 8
        %s292 = scalar_lea.vmem [#allocation11], %s291
        %v294 = vld [vmem:[%s249] sm:$0xff]
        %v295 = vadd.f32 %v294, 1e-10
        %v296 = vpack.c.bf16 %v295, %v295
        %v297 = vld [vmem:[#allocation7] sm:$0xff]
        %v298 = vld [vmem:[#allocation7 + $0x8] sm:$0xff]
        %v299 = vld [vmem:[#allocation7 + $0x10] sm:$0xff]
        %v300 = vld [vmem:[#allocation7 + $0x18] sm:$0xff]
        %v301 = vld [vmem:[#allocation7 + $0x20] sm:$0xff]
        %v302 = vld [vmem:[#allocation7 + $0x28] sm:$0xff]
        %v303 = vld [vmem:[#allocation7 + $0x30] sm:$0xff]
        %v304 = vld [vmem:[#allocation7 + $0x38] sm:$0xff]
        %v305 = vld [vmem:[#allocation7 + $0x40] sm:$0xff]
        %v306 = vld [vmem:[#allocation7 + $0x48] sm:$0xff]
        %v307 = vld [vmem:[#allocation7 + $0x50] sm:$0xff]
        %v308 = vld [vmem:[#allocation7 + $0x58] sm:$0xff]
        %v309 = vld [vmem:[#allocation7 + $0x60] sm:$0xff]
        %v310 = vld [vmem:[#allocation7 + $0x68] sm:$0xff]
        %v311 = vld [vmem:[#allocation7 + $0x70] sm:$0xff]
        %v312 = vld [vmem:[#allocation7 + $0x78] sm:$0xff]
        %v329 = vunpack.c.l.b16 %v297
        %v330 = vunpack.c.h.b16 %v297
        %v331 = vunpack.c.l.b16 %v298
        %v332 = vunpack.c.h.b16 %v298
        %v333 = vunpack.c.l.b16 %v299
        %v334 = vunpack.c.h.b16 %v299
        %v335 = vunpack.c.l.b16 %v300
        %v336 = vunpack.c.h.b16 %v300
        %v337 = vunpack.c.l.b16 %v301
        %v338 = vunpack.c.h.b16 %v301
        %v339 = vunpack.c.l.b16 %v302
        %v340 = vunpack.c.h.b16 %v302
        %v341 = vunpack.c.l.b16 %v303
        %v342 = vunpack.c.h.b16 %v303
        %v343 = vunpack.c.l.b16 %v304
        %v344 = vunpack.c.h.b16 %v304
        %v345 = vunpack.c.l.b16 %v305
        %v346 = vunpack.c.h.b16 %v305
        %v347 = vunpack.c.l.b16 %v306
        %v348 = vunpack.c.h.b16 %v306
        %v349 = vunpack.c.l.b16 %v307
        %v350 = vunpack.c.h.b16 %v307
        %v351 = vunpack.c.l.b16 %v308
        %v352 = vunpack.c.h.b16 %v308
        %v353 = vunpack.c.l.b16 %v309
        %v354 = vunpack.c.h.b16 %v309
        %v355 = vunpack.c.l.b16 %v310
        %v356 = vunpack.c.h.b16 %v310
        %v357 = vunpack.c.l.b16 %v311
        %v358 = vunpack.c.h.b16 %v311
        %v359 = vunpack.c.l.b16 %v312
        %v360 = vunpack.c.h.b16 %v312
        %v361 = vpack.c.b16 %v331, %v329
        %v362 = vpack.c.b16 %v332, %v330
        %v363 = vpack.c.b16 %v335, %v333
        %v364 = vpack.c.b16 %v336, %v334
        %v365 = vpack.c.b16 %v339, %v337
        %v366 = vpack.c.b16 %v340, %v338
        %v367 = vpack.c.b16 %v343, %v341
        %v368 = vpack.c.b16 %v344, %v342
        %v369 = vpack.c.b16 %v347, %v345
        %v370 = vpack.c.b16 %v348, %v346
        %v371 = vpack.c.b16 %v351, %v349
        %v372 = vpack.c.b16 %v352, %v350
        %v373 = vpack.c.b16 %v355, %v353
        %v374 = vpack.c.b16 %v356, %v354
        %v375 = vpack.c.b16 %v359, %v357
        %v376 = vpack.c.b16 %v360, %v358
        %393 = vmatprep.subr.bf16.mxu0 %v362
        %394 = vmatpush1.bf16.msra.mxu0 %v361
        %395 = vmatprep.subr.bf16.mxu0 %v364
        %396 = vmatpush1.bf16.msra.mxu0 %v363
        %397 = vmatprep.subr.bf16.mxu0 %v366
        %398 = vmatpush1.bf16.msra.mxu0 %v365
        %399 = vmatprep.subr.bf16.mxu0 %v368
        %400 = vmatpush1.bf16.msra.mxu0 %v367
        %401 = vmatprep.subr.bf16.mxu0 %v370
        %402 = vmatpush1.bf16.msra.mxu0 %v369
        %403 = vmatprep.subr.bf16.mxu0 %v372
        %404 = vmatpush1.bf16.msra.mxu0 %v371
        %405 = vmatprep.subr.bf16.mxu0 %v374
        %406 = vmatpush1.bf16.msra.mxu0 %v373
        %407 = vmatprep.subr.bf16.mxu0 %v376
        %408 = vmatpush1.bf16.msra.mxu0 %v375
        %409 = vmatprep.subr.bf16.mxu0 0
        %410 = vmatpush1.bf16.msra.mxu0 0
        %411 = vmatprep.subr.bf16.mxu0 0
        %412 = vmatpush1.bf16.msra.mxu0 0
        %413 = vmatprep.subr.bf16.mxu0 0
        %414 = vmatpush1.bf16.msra.mxu0 0
        %415 = vmatprep.subr.bf16.mxu0 0
        %416 = vmatpush1.bf16.msra.mxu0 0
        %417 = vmatprep.subr.bf16.mxu0 0
        %418 = vmatpush1.bf16.msra.mxu0 0
        %419 = vmatprep.subr.bf16.mxu0 0
        %420 = vmatpush1.bf16.msra.mxu0 0
        %421 = vmatprep.subr.bf16.mxu0 0
        %422 = vmatpush1.bf16.msra.mxu0 0
        %423 = vmatprep.subr.bf16.mxu0 0
        %424 = vmatpush1.bf16.msra.mxu0 0
        %425 = vmatprep.mubr.bf16.mxu0 0
        %426 = vmatmul.mubr.bf16.gmra.mrb[0].mxu0 %v296
        %v427 = vpop.f32.mrb[0].mxu0
        %v428 = vadd.f32 0.0, %v427
        %v429 = vpop.f32.mrb[0].mxu0
        %v430 = vadd.f32 0.0, %v429
        %v431 = vpop.f32.mrb[0].mxu0
        %v432 = vpop.f32.mrb[0].mxu0
        %433 = vdwg.mxu0
        %v434 = vld [vmem:[#allocation5] sm:$0xf]
        %v435 = vpack.c.bf16 %v428, %v428
        %v436 = vpack.c.bf16 %v430, %v430
        %vm437 = vcmask 64512
        %v439 = vsel %vm437, %v434, 0
        %vm441 = vcmask 1043456
        %v443 = vsel %vm441, %v435, 0
        %v446 = vsel %vm441, %v436, 0
        %448 = vmatprep.subr.bf16.mxu0 %v446
        %449 = vmatpush1.bf16.msra.mxu0 %v443
        %450 = vmatprep.subr.bf16.mxu0 0
        %451 = vmatpush1.bf16.msra.mxu0 0
        %452 = vmatprep.subr.bf16.mxu0 0
        %453 = vmatpush1.bf16.msra.mxu0 0
        %454 = vmatprep.subr.bf16.mxu0 0
        %455 = vmatpush1.bf16.msra.mxu0 0
        %456 = vmatprep.subr.bf16.mxu0 0
        %457 = vmatpush1.bf16.msra.mxu0 0
        %458 = vmatprep.subr.bf16.mxu0 0
        %459 = vmatpush1.bf16.msra.mxu0 0
        %460 = vmatprep.subr.bf16.mxu0 0
        %461 = vmatpush1.bf16.msra.mxu0 0
        %462 = vmatprep.subr.bf16.mxu0 0
        %463 = vmatpush1.bf16.msra.mxu0 0
        %464 = vmatprep.subr.bf16.mxu0 0
        %465 = vmatpush1.bf16.msra.mxu0 0
        %466 = vmatprep.subr.bf16.mxu0 0
        %467 = vmatpush1.bf16.msra.mxu0 0
        %468 = vmatprep.subr.bf16.mxu0 0
        %469 = vmatpush1.bf16.msra.mxu0 0
        %470 = vmatprep.subr.bf16.mxu0 0
        %471 = vmatpush1.bf16.msra.mxu0 0
        %472 = vmatprep.subr.bf16.mxu0 0
        %473 = vmatpush1.bf16.msra.mxu0 0
        %474 = vmatprep.subr.bf16.mxu0 0
        %475 = vmatpush1.bf16.msra.mxu0 0
        %476 = vmatprep.subr.bf16.mxu0 0
        %477 = vmatpush1.bf16.msra.mxu0 0
        %478 = vmatprep.subr.bf16.mxu0 0
        %479 = vmatpush1.bf16.msra.mxu0 0
        %480 = vmatprep.mubr.bf16.mxu0 0
        %481 = vmatmul.mubr.bf16.gmra.mrb[0].mxu0 %v439
        %v482 = vpop.f32.mrb[0].mxu0
        %v483 = vadd.f32 0.0, %v482
        %v484 = vpop.f32.mrb[0].mxu0
        %v485 = vadd.f32 0.0, %v484
        %v486 = vpop.f32.mrb[0].mxu0
        %v487 = vpop.f32.mrb[0].mxu0
        %488 = vdwg.mxu0
        %v489 = vmax.f32 %v483, 1e-12
        %v490 = vmax.f32 %v485, 1e-12
        %v491 = vlog2.pop %v489
        %v492 = vmul.f32 %v491, 0.6931472
        %v493 = vlog2.pop %v490
        %v494 = vmul.f32 %v493, 0.6931472
        %495 = vst [vmem:[%s285] sm:$0xff] %v492
        %496 = vst [vmem:[%s285 + $0x8] sm:$0xff] %v494
        %v497 = vpack.c.bf16 %v492, %v492
        %v498 = vpack.c.bf16 %v494, %v494
        %v499 = vld [vmem:[#allocation8] sm:$0xf]
        %v500 = vld [vmem:[#allocation8 + $0x4] sm:$0xf]
        %v501 = vld [vmem:[#allocation8 + $0x8] sm:$0xf]
        %v502 = vld [vmem:[#allocation8 + $0xc] sm:$0xf]
        %v503 = vld [vmem:[#allocation8 + $0x10] sm:$0xf]
        %v504 = vld [vmem:[#allocation8 + $0x14] sm:$0xf]
        %v505 = vld [vmem:[#allocation8 + $0x18] sm:$0xf]
        %v506 = vld [vmem:[#allocation8 + $0x1c] sm:$0xf]
        %v507 = vld [vmem:[#allocation8 + $0x20] sm:$0xf]
        %v508 = vld [vmem:[#allocation8 + $0x24] sm:$0xf]
        %v509 = vld [vmem:[#allocation8 + $0x28] sm:$0xf]
        %v510 = vld [vmem:[#allocation8 + $0x2c] sm:$0xf]
        %v511 = vld [vmem:[#allocation8 + $0x30] sm:$0xf]
        %v512 = vld [vmem:[#allocation8 + $0x34] sm:$0xf]
        %v513 = vld [vmem:[#allocation8 + $0x38] sm:$0xf]
        %v514 = vld [vmem:[#allocation8 + $0x3c] sm:$0xf]
        %v515 = vld [vmem:[#allocation8 + $0x40] sm:$0xf]
        %v516 = vld [vmem:[#allocation8 + $0x44] sm:$0xf]
        %v517 = vld [vmem:[#allocation8 + $0x48] sm:$0xf]
        %v518 = vld [vmem:[#allocation8 + $0x4c] sm:$0xf]
        %v519 = vld [vmem:[#allocation8 + $0x50] sm:$0xf]
        %v520 = vld [vmem:[#allocation8 + $0x54] sm:$0xf]
        %v521 = vld [vmem:[#allocation8 + $0x58] sm:$0xf]
        %v522 = vld [vmem:[#allocation8 + $0x5c] sm:$0xf]
        %v523 = vld [vmem:[#allocation8 + $0x60] sm:$0xf]
        %v524 = vld [vmem:[#allocation8 + $0x64] sm:$0xf]
        %v525 = vld [vmem:[#allocation8 + $0x68] sm:$0xf]
        %v526 = vld [vmem:[#allocation8 + $0x6c] sm:$0xf]
        %v527 = vld [vmem:[#allocation8 + $0x70] sm:$0xf]
        %v528 = vld [vmem:[#allocation8 + $0x74] sm:$0xf]
        %v529 = vld [vmem:[#allocation8 + $0x78] sm:$0xf]
        %v530 = vld [vmem:[#allocation8 + $0x7c] sm:$0xf]
        %v563 = vunpack.c.l.b16 %v499
        %v564 = vunpack.c.l.b16 %v500
        %v565 = vunpack.c.l.b16 %v501
        %v566 = vunpack.c.l.b16 %v502
        %v567 = vunpack.c.l.b16 %v503
        %v568 = vunpack.c.l.b16 %v504
        %v569 = vunpack.c.l.b16 %v505
        %v570 = vunpack.c.l.b16 %v506
        %v571 = vunpack.c.l.b16 %v507
        %v572 = vunpack.c.l.b16 %v508
        %v573 = vunpack.c.l.b16 %v509
        %v574 = vunpack.c.l.b16 %v510
        %v575 = vunpack.c.l.b16 %v511
        %v576 = vunpack.c.l.b16 %v512
        %v577 = vunpack.c.l.b16 %v513
        %v578 = vunpack.c.l.b16 %v514
        %v579 = vunpack.c.l.b16 %v515
        %v580 = vunpack.c.l.b16 %v516
        %v581 = vunpack.c.l.b16 %v517
        %v582 = vunpack.c.l.b16 %v518
        %v583 = vunpack.c.l.b16 %v519
        %v584 = vunpack.c.l.b16 %v520
        %v585 = vunpack.c.l.b16 %v521
        %v586 = vunpack.c.l.b16 %v522
        %v587 = vunpack.c.l.b16 %v523
        %v588 = vunpack.c.l.b16 %v524
        %v589 = vunpack.c.l.b16 %v525
        %v590 = vunpack.c.l.b16 %v526
        %v591 = vunpack.c.l.b16 %v527
        %v592 = vunpack.c.l.b16 %v528
        %v593 = vunpack.c.l.b16 %v529
        %v594 = vunpack.c.l.b16 %v530
        %v595 = vpack.c.b16 %v564, %v563
        %v596 = vpack.c.b16 %v566, %v565
        %v597 = vpack.c.b16 %v568, %v567
        %v598 = vpack.c.b16 %v570, %v569
        %v599 = vpack.c.b16 %v572, %v571
        %v600 = vpack.c.b16 %v574, %v573
        %v601 = vpack.c.b16 %v576, %v575
        %v602 = vpack.c.b16 %v578, %v577
        %v603 = vpack.c.b16 %v580, %v579
        %v604 = vpack.c.b16 %v582, %v581
        %v605 = vpack.c.b16 %v584, %v583
        %v606 = vpack.c.b16 %v586, %v585
        %v607 = vpack.c.b16 %v588, %v587
        %v608 = vpack.c.b16 %v590, %v589
        %v609 = vpack.c.b16 %v592, %v591
        %v610 = vpack.c.b16 %v594, %v593
        %627 = vmatprep.subr.bf16.mxu0 0
        %628 = vmatpush1.bf16.msra.mxu0 %v595
        %629 = vmatprep.subr.bf16.mxu0 0
        %630 = vmatpush1.bf16.msra.mxu0 %v596
        %631 = vmatprep.subr.bf16.mxu0 0
        %632 = vmatpush1.bf16.msra.mxu0 %v597
        %633 = vmatprep.subr.bf16.mxu0 0
        %634 = vmatpush1.bf16.msra.mxu0 %v598
        %635 = vmatprep.subr.bf16.mxu0 0
        %636 = vmatpush1.bf16.msra.mxu0 %v599
        %637 = vmatprep.subr.bf16.mxu0 0
        %638 = vmatpush1.bf16.msra.mxu0 %v600
        %639 = vmatprep.subr.bf16.mxu0 0
        %640 = vmatpush1.bf16.msra.mxu0 %v601
        %641 = vmatprep.subr.bf16.mxu0 0
        %642 = vmatpush1.bf16.msra.mxu0 %v602
        %643 = vmatprep.subr.bf16.mxu0 0
        %644 = vmatpush1.bf16.msra.mxu0 %v603
        %645 = vmatprep.subr.bf16.mxu0 0
        %646 = vmatpush1.bf16.msra.mxu0 %v604
        %647 = vmatprep.subr.bf16.mxu0 0
        %648 = vmatpush1.bf16.msra.mxu0 %v605
        %649 = vmatprep.subr.bf16.mxu0 0
        %650 = vmatpush1.bf16.msra.mxu0 %v606
        %651 = vmatprep.subr.bf16.mxu0 0
        %652 = vmatpush1.bf16.msra.mxu0 %v607
        %653 = vmatprep.subr.bf16.mxu0 0
        %654 = vmatpush1.bf16.msra.mxu0 %v608
        %655 = vmatprep.subr.bf16.mxu0 0
        %656 = vmatpush1.bf16.msra.mxu0 %v609
        %657 = vmatprep.subr.bf16.mxu0 0
        %658 = vmatpush1.bf16.msra.mxu0 %v610
        %659 = vmatprep.mubr.bf16.mxu0 %v498
        %660 = vmatmul.mubr.bf16.gmra.mrb[0].mxu0 %v497
        %v661 = vpop.f32.mrb[0].mxu0
        %v662 = vadd.f32 0.0, %v661
        %v663 = vpop.f32.mrb[0].mxu0
        %v664 = vpop.f32.mrb[0].mxu0
        %v665 = vpop.f32.mrb[0].mxu0
        %666 = vdwg.mxu0
        %667 = vst [vmem:[%s292] sm:$0xff] %v662
        %s668 = sand.u32 %s125, 1
        %s669 = scalar_lea.sflag [#allocation4], %s668
        %s670 = sand.u32 %s125, 1
        %s671 = smul.addr %s670, 16
        %s672 = scalar_lea.vmem [#allocation10], %s671
        %s673 = sand.u32 %s151, 1
        %s674 = scalar_lea.sflag [#allocation12], %s673
        %s675 = sand.u32 %s151, 1
        %s676 = smul.addr %s675, 8
        %s677 = scalar_lea.vmem [#allocation11], %s676
        // Predicated region
        $region53: #{tpu_custom_call.1} parent=35 // pred_check
          %p678 = pneg %p135
        $region54: #{tpu_custom_call.1} parent=35 // pred_check_branch
          %680 = sbr.rel (%p678) target = $region56
        $region55: #{tpu_custom_call.1} parent=35 // pred_region
          %s682 = ssub.s32 256, 256
          %683 = vsyncadd %s669, %s682
          %s684 = smul.addr %s28, 2
          %s685 = smul.addr %s684, 128
          %s686 = scalar_lea.hbm %s4, %s685
          %s688 = sshll.u32 %s672, 4
          %s689 = int_to_ptr.vmem [resolvable:$true] %s688
          %691 = dma.vmem_to_hbm [thread:$0]  %s689, 256, %s686, %s669
        $region56: #{tpu_custom_call.1} parent=35 // pred_fallthru
          _
        // Predicated region
        $region57: #{tpu_custom_call.1} parent=35 // pred_check
          %p692 = pneg %p161
        $region58: #{tpu_custom_call.1} parent=35 // pred_check_branch
          %694 = sbr.rel (%p692) target = $region60
        $region59: #{tpu_custom_call.1} parent=35 // pred_region
          %s696 = ssub.s32 128, 128
          %697 = vsyncadd %s674, %s696
          %s698 = smul.addr %s28, 128
          %s699 = scalar_lea.hbm %s5, %s698
          %s701 = sshll.u32 %s677, 4
          %s702 = int_to_ptr.vmem [resolvable:$true] %s701
          %704 = dma.vmem_to_hbm [thread:$0]  %s702, 128, %s699, %s674
        $region60: #{tpu_custom_call.1} parent=35 // pred_fallthru
          _
      $region36: #{tpu_custom_call.1} parent=5 // pred_fallthru
        _
      %p705 = scmp.le.s32.totalorder 2, %s23
      // Predicated region
      $region61: #{tpu_custom_call.1} parent=5 // pred_check
        %p706 = pneg %p705
      $region62: #{tpu_custom_call.1} parent=5 // pred_check_branch
        %708 = sbr.rel (%p706) target = $region64
      $region63: #{tpu_custom_call.1} parent=5 // pred_region
        %s709 = ssub.s32 %s23, 2
        // Predicated region
        $region65: #{tpu_custom_call.1} parent=63 // pred_check
          %p710 = pneg %p141
        $region66: #{tpu_custom_call.1} parent=63 // pred_check_branch
          %712 = sbr.rel (%p710) target = $region68
        $region67: #{tpu_custom_call.1} parent=63 // pred_region
          %s713 = sand.u32 %s126, 1
          %s714 = scalar_lea.sflag [#allocation4], %s713
          %s715 = sand.u32 %s126, 1
          %s716 = smul.addr %s715, 16
          %s717 = scalar_lea.vmem [#allocation10], %s716
          %718 = dma.done %s714, 256
        $region68: #{tpu_custom_call.1} parent=63 // pred_fallthru
          _
        // Predicated region
        $region69: #{tpu_custom_call.1} parent=63 // pred_check
          %p719 = pneg %p167
        $region70: #{tpu_custom_call.1} parent=63 // pred_check_branch
          %721 = sbr.rel (%p719) target = $region72
        $region71: #{tpu_custom_call.1} parent=63 // pred_region
          %s722 = sand.u32 %s152, 1
          %s723 = scalar_lea.sflag [#allocation12], %s722
          %s724 = sand.u32 %s152, 1
          %s725 = smul.addr %s724, 8
          %s726 = scalar_lea.vmem [#allocation11], %s725
          %727 = dma.done %s723, 128
        $region72: #{tpu_custom_call.1} parent=63 // pred_fallthru
          _
      $region64: #{tpu_custom_call.1} parent=5 // pred_fallthru
        _
    $region6: #{tpu_custom_call.1} parent=1 // loop_footer
      %s27 = sadd.s32 1, %s23
    $region7: #{tpu_custom_call.1} parent=1 // loop_footer_branch
      %22 = sbr.rel target = $region3
    $region8: #{tpu_custom_call.1} parent=1 // loop_exit
      _
    %728 = vsyncpa [#allocation3], 1
    %s729 = scalar_lea.sflag [#allocation3], 1
    %730 = vsyncpa %s729, 1
    %731 = vsyncpa [#allocation6], 1
    %732 = vsyncpa [#allocation9], 1
    %733 = vsyncpa [#allocation4], 1
    %s734 = scalar_lea.sflag [#allocation4], 1
    %735 = vsyncpa %s734, 1
    %736 = vsyncpa [#allocation12], 1
    %s737 = scalar_lea.sflag [#allocation12], 1
    %738 = vsyncpa %s737, 1

</llo_original>
